<compile_context>
chip_gen: v6e
topology: v6e:2x2x1
jax: 0.10.0
libtpu: 0.0.40
codegen_flags: <defaults>
</compile_context>

<pallas_src>
from typing import NamedTuple

import numpy as np

import jax
import jax.numpy as jnp
from jax.experimental import pallas as pl
from jax.experimental.pallas import tpu as pltpu


def _round_up(x, m):
    return ((x + m - 1) // m) * m


class PreparedAdjacency(NamedTuple):
    adj_p: jax.Array   # (Np, Kp) padded adjacency in storage dtype
    kidx: jax.Array    # (nI * nk_eff,) int32, nonzero col-block ids (flattened)
    kcnt: jax.Array    # (nI,) int32, nonzero col-block count per row block
    n: int
    k: int
    tm: int
    tk: int
    nk_eff: int


def prepare_adjacency(adj, *, tm=512, tk=512, storage_dtype=None):
    """Pad the adjacency and build block-sparsity metadata.

    Call once per graph (outside jit, with a concrete adjacency) and reuse the
    result across GCN layers / steps.  For a 0/1 adjacency, bf16 storage is
    exact and halves the dominant HBM stream (int8 on v6e / fp8 on v7x quarter
    it); a normalized fractional adjacency should stay f32.
    """
    adj_host = np.asarray(adj, dtype=np.float32)
    N, K = adj_host.shape
    if storage_dtype is None:
        storage_dtype = adj.dtype
    itemsize = jnp.dtype(storage_dtype).itemsize
    sub = 32 if itemsize == 1 else (16 if itemsize == 2 else 8)

    tm = _round_up(min(tm, _round_up(N, sub)), sub)
    tk = _round_up(min(tk, _round_up(K, 128)), 128)
    Np, Kp = _round_up(N, tm), _round_up(K, tk)

    pad = np.zeros((Np, Kp), dtype=np.float32)
    pad[:N, :K] = adj_host
    nI, nK = Np // tm, Kp // tk

    blk_nz = pad.reshape(nI, tm, nK, tk).any(axis=(1, 3))      # (nI, nK) bool
    kcnt = blk_nz.sum(axis=1).astype(np.int32)                 # (nI,)
    nk_eff = max(int(kcnt.max()), 1)

    # Nonzero column-block ids first; padded steps repeat the last valid entry
    # so the already-resident block is reused (no extra DMA).
    kidx = np.zeros((nI, nk_eff), dtype=np.int32)
    for i in range(nI):
        nz = np.flatnonzero(blk_nz[i])
        if nz.size == 0:
            nz = np.zeros((1,), dtype=np.int64)
        kidx[i, :nz.size] = nz
        kidx[i, nz.size:] = nz[-1]

    return PreparedAdjacency(
        adj_p=jnp.asarray(pad, dtype=storage_dtype),
        kidx=jnp.asarray(kidx.reshape(-1)),
        kcnt=jnp.asarray(kcnt),
        n=N, k=K, tm=tm, tk=tk, nk_eff=nk_eff,
    )


def _spmm_kernel(kidx_ref, kcnt_ref, adj_ref, emb_ref, out_ref):
    # grid = (row-blocks i, feature-blocks j, reduction blocks kk); kk is last.
    i = pl.program_id(0)
    kk = pl.program_id(2)

    @pl.when(kk == 0)
    def _():
        out_ref[...] = jnp.zeros_like(out_ref)

    # Only accumulate for genuinely nonzero adjacency blocks of this row-block.
    @pl.when(kk < kcnt_ref[i])
    def _():
        a = adj_ref[...]
        if a.dtype != jnp.float32:
            # int8 / fp8 0-1 adjacencies upcast exactly; bf16 is a no-op.
            a = a.astype(jnp.bfloat16)
        e = emb_ref[...].astype(a.dtype)
        # bf16 x bf16 MXU matmul, f32 accumulation into the resident out block.
        out_ref[...] += jnp.dot(a, e, preferred_element_type=jnp.float32)


def gcn_layer(adj, embeds, *, tm=512, tk=512, tn=None, max_tn=2048,
              vmem_limit_bytes=None):
    """out = adj @ embeds  (torch.spmm with a dense / blocked adjacency).

    `adj` may be a raw (N, K) array or, preferably, a PreparedAdjacency from
    prepare_adjacency() (hoists padding + block metadata out of the call).
    """
    prep = adj if isinstance(adj, PreparedAdjacency) else prepare_adjacency(
        adj, tm=tm, tk=tk)
    N, K, tm, tk, nk_eff = prep.n, prep.k, prep.tm, prep.tk, prep.nk_eff
    adj_p = prep.adj_p
    Np, Kp = adj_p.shape
    K2, D = embeds.shape
    assert K == K2, "adj columns must match embeds rows"
    out_dtype = jnp.float32

    # Keep the full (padded) feature width resident so the adjacency streams
    # exactly once; cap it so the resident emb/out tiles respect v7x VMEM.
    if tn is None:
        tn = min(_round_up(D, 128), max_tn)
    tn = _round_up(tn, 128)
    Dp = _round_up(D, tn)

    emb_p = embeds
    if (Kp, Dp) != (K, D):
        emb_p = jnp.pad(embeds, ((0, Kp - K), (0, Dp - D)))

    nI, nJ = Np // tm, Dp // tn

    if vmem_limit_bytes is None:
        adj_tile = tm * tk * adj_p.dtype.itemsize
        emb_tile = tk * tn * emb_p.dtype.itemsize
        out_tile = tm * tn * jnp.dtype(out_dtype).itemsize
        vmem_limit_bytes = int(
            min(max(2 * (adj_tile + emb_tile + out_tile) + (4 << 20), 32 << 20),
                64 << 20))

    cost = pl.CostEstimate(
        flops=2 * N * K * D,
        bytes_accessed=(adj_p.size * adj_p.dtype.itemsize
                        + emb_p.size * emb_p.dtype.itemsize
                        + Np * Dp * jnp.dtype(out_dtype).itemsize),
        transcendentals=0,
    )

    def adj_map(i, j, kk, kid, kcn):
        return (i, kid[i * nk_eff + kk])

    def emb_map(i, j, kk, kid, kcn):
        return (kid[i * nk_eff + kk], j)

    def out_map(i, j, kk, kid, kcn):
        return (i, j)

    out = pl.pallas_call(
        _spmm_kernel,
        out_shape=jax.ShapeDtypeStruct((Np, Dp), out_dtype),
        grid_spec=pltpu.PrefetchScalarGridSpec(
            num_scalar_prefetch=2,
            grid=(nI, nJ, nk_eff),
            in_specs=[
                pl.BlockSpec((tm, tk), adj_map),   # adjacency tile
                pl.BlockSpec((tk, tn), emb_map),   # embedding tile (full D)
            ],
            out_specs=pl.BlockSpec((tm, tn), out_map),
        ),
        compiler_params=pltpu.CompilerParams(
            dimension_semantics=("parallel", "parallel", "arbitrary"),
            vmem_limit_bytes=vmem_limit_bytes,
        ),
        cost_estimate=cost,
    )(prep.kidx, prep.kcnt, adj_p, emb_p)

    if (Np, Dp) != (N, D):
        out = out[:N, :D]
    return out


if __name__ == "__main__":
    key = jax.random.PRNGKey(0)
    k_adj, k_emb = jax.random.split(key)

    N = 256   # graph nodes
    D = 128   # embedding dim

    # ~10% dense 0/1 adjacency (bf16 storage is exact for 0/1 values).
    adj_f32 = (jax.random.uniform(k_adj, (N, N)) < 0.1).astype(jnp.float32)
    embeds = jax.random.normal(k_emb, (N, D), dtype=jnp.float32).astype(jnp.bfloat16)

    prep = prepare_adjacency(adj_f32, storage_dtype=jnp.bfloat16)  # once per graph
    out = jax.block_until_ready(gcn_layer(prep, embeds))

    ref = jnp.dot(adj_f32, embeds.astype(jnp.float32),
                  precision=jax.lax.Precision.HIGHEST)
    assert out.shape == (N, D) and out.dtype == jnp.float32
    assert jnp.allclose(out, ref, atol=1e-3, rtol=1e-3), (
        float(jnp.max(jnp.abs(out - ref))))
    print("KERNEL_OK")
</pallas_src>

<mosaic_0001>
module attributes {stable_mosaic.version = 11 : i64} {
  func.func @_spmm_kernel(%arg0: i32, %arg1: i32, %arg2: i32, %arg3: memref<1xi32, #tpu.memory_space<smem>>, %arg4: memref<1xi32, #tpu.memory_space<smem>>, %arg5: memref<256x256xbf16, #tpu.memory_space<vmem>>, %arg6: memref<256x128xbf16, #tpu.memory_space<vmem>>, %arg7: memref<256x128xf32, #tpu.memory_space<vmem>>) attributes {dimension_semantics = [#tpu.dimension_semantics<parallel>, #tpu.dimension_semantics<parallel>, #tpu.dimension_semantics<arbitrary>], iteration_bounds = array<i64: 1, 1, 1>, scalar_prefetch = 2 : i64, scratch_operands = 0 : i64, tpu.core_type = #tpu.core_type<tc>, window_params = [{transform_indices = @transform_0, window_bounds = array<i64: 256, 256>}, {transform_indices = @transform_1, window_bounds = array<i64: 256, 128>}, {transform_indices = @transform_2, window_bounds = array<i64: 256, 128>}]} {
    %c0_i32 = arith.constant 0 : i32
    %0 = arith.cmpi eq, %arg2, %c0_i32 : i32
    %1 = arith.extui %0 : i1 to i32
    %c0_i32_0 = arith.constant 0 : i32
    %2 = arith.cmpi ne, %1, %c0_i32_0 : i32
    scf.if %2 {
      %cst = arith.constant 0.000000e+00 : f32
      %8 = vector.broadcast %cst : f32 to vector<256x128xf32>
      %c0 = arith.constant 0 : index
      %c0_2 = arith.constant 0 : index
      %9 = vector.load %arg7[%c0, %c0_2] : memref<256x128xf32, #tpu.memory_space<vmem>>, vector<256x128xf32>
      tpu.vector_store %arg7[%c0, %c0_2], %8 {strides = array<i32>} : memref<256x128xf32, #tpu.memory_space<vmem>>, vector<256x128xf32>,
    } else {
    }
    %3 = arith.index_cast %arg0 : i32 to index
    %4 = memref.load %arg4[%3] : memref<1xi32, #tpu.memory_space<smem>>
    %5 = arith.cmpi slt, %arg2, %4 : i32
    %6 = arith.extui %5 : i1 to i32
    %c0_i32_1 = arith.constant 0 : i32
    %7 = arith.cmpi ne, %6, %c0_i32_1 : i32
    scf.if %7 {
      %c0 = arith.constant 0 : index
      %c0_2 = arith.constant 0 : index
      %8 = vector.load %arg5[%c0, %c0_2] : memref<256x256xbf16, #tpu.memory_space<vmem>>, vector<256x256xbf16>
      %c0_3 = arith.constant 0 : index
      %c0_4 = arith.constant 0 : index
      %9 = vector.load %arg6[%c0_3, %c0_4] : memref<256x128xbf16, #tpu.memory_space<vmem>>, vector<256x128xbf16>
      %c0_5 = arith.constant 0 : index
      %c0_6 = arith.constant 0 : index
      %10 = vector.load %arg7[%c0_5, %c0_6] : memref<256x128xf32, #tpu.memory_space<vmem>>, vector<256x128xf32>
      %cst = arith.constant dense<0.000000e+00> : vector<256x128xf32>
      %11 = tpu.matmul %8, %9, %cst {dimension_numbers = #tpu.dot_dimension_numbers<[1], [0], [0], [1], [0, 0, 1, 1], [], []>} : vector<256x256xbf16>, vector<256x128xbf16>, vector<256x128xf32> -> vector<256x128xf32>
      %12 = arith.addf %10, %11 : vector<256x128xf32>
      %c0_7 = arith.constant 0 : index
      %c0_8 = arith.constant 0 : index
      %13 = vector.load %arg7[%c0_7, %c0_8] : memref<256x128xf32, #tpu.memory_space<vmem>>, vector<256x128xf32>
      tpu.vector_store %arg7[%c0_7, %c0_8], %12 {strides = array<i32>} : memref<256x128xf32, #tpu.memory_space<vmem>>, vector<256x128xf32>,
    } else {
    }
    return
  }
  func.func @transform_0(%arg0: i32, %arg1: i32, %arg2: i32, %arg3: memref<1xi32, #tpu.memory_space<smem>>, %arg4: memref<1xi32, #tpu.memory_space<smem>>) -> (i32, i32) {
    %c1_i32 = arith.constant 1 : i32
    %0 = arith.muli %arg0, %c1_i32 : i32
    %1 = arith.addi %0, %arg2 : i32
    %2 = arith.index_cast %1 : i32 to index
    %3 = memref.load %arg3[%2] : memref<1xi32, #tpu.memory_space<smem>>
    %c0_i32 = arith.constant 0 : i32
    return %arg0, %3 : i32, i32
  }
  func.func @transform_1(%arg0: i32, %arg1: i32, %arg2: i32, %arg3: memref<1xi32, #tpu.memory_space<smem>>, %arg4: memref<1xi32, #tpu.memory_space<smem>>) -> (i32, i32) {
    %c1_i32 = arith.constant 1 : i32
    %0 = arith.muli %arg0, %c1_i32 : i32
    %1 = arith.addi %0, %arg2 : i32
    %2 = arith.index_cast %1 : i32 to index
    %3 = memref.load %arg3[%2] : memref<1xi32, #tpu.memory_space<smem>>
    %c0_i32 = arith.constant 0 : i32
    return %3, %arg1 : i32, i32
  }
  func.func @transform_2(%arg0: i32, %arg1: i32, %arg2: i32, %arg3: memref<1xi32, #tpu.memory_space<smem>>, %arg4: memref<1xi32, #tpu.memory_space<smem>>) -> (i32, i32) {
    %c0_i32 = arith.constant 0 : i32
    return %arg0, %arg1 : i32, i32
  }
}

</mosaic_0001>

<llo_original>
// kernel: tpu_custom_call.1
$region0: #{tpu_custom_call.1}
  #allocation0 [shape = 'u32[]', space=smem, size = 0x4, offset = 0x4, fixed_abs, tag = 'smem constant byte address 0x4 - core index']
  #allocation1 [shape = 'u32[144,128]{1,0:T(1,128)}', space=vmem, size = 0x12000, scoped, tag = 'internal scratch']
  #allocation2 [shape = 's32[1]{0}', space=sflag, size = 0x4, scoped, tag = 'scoped memory for tpu_custom_call.1']
  #allocation3 [shape = 's32[1]{0:T(128)S(6)}', space=smem, size = 0x200, scoped, tag = 'prefetched SMEM operand 0']
  #allocation4 [shape = 's32[1]{0:T(128)S(6)}', space=smem, size = 0x200, scoped, tag = 'prefetched SMEM operand 1']
  %s0 = inlined_call_operand.<no memory space> [shape: s32[1], index: 0, kind: input, shape index: {}]
  %s1 = inlined_call_operand.<no memory space> [shape: s32[1], index: 1, kind: input, shape index: {}]
  %s2 = inlined_call_operand.hbm [shape: bf16[256,256], index: 2, kind: input, shape index: {}]
  %s3 = inlined_call_operand.hbm [shape: bf16[256,128], index: 3, kind: input, shape index: {}]
  %s4 = inlined_call_operand.hbm [shape: f32[256,128], index: 4, kind: output, shape index: {}]
  %s5 = sld [smem:[#allocation0]]
  $region34: #{tpu_custom_call.1} parent=0
    _
  %s7 = ssub.s32 1, %s5
  %s8 = scalar_select 0, %s7, %s5
  %9 = sst [smem:[#allocation3]] %s0
  %10 = sst [smem:[#allocation4]] %s1
  $region1: #{tpu_custom_call.1} parent=0
    #allocation5 [shape = 'u8[131072]{0}', space=vmem, size = 0x20000, scoped, tag = 'input window, operand 2, single buffered']
    #allocation6 [shape = 's32[1]{0}', space=sflag, size = 0x4, scoped, tag = 'scoped memory for tpu_custom_call.1']
    #allocation7 [shape = 's32[1]{0}', space=sflag, size = 0x4, scoped, tag = 'scoped memory for tpu_custom_call.1']
    #allocation8 [shape = 'u8[65536]{0}', space=vmem, size = 0x10000, scoped, tag = 'input window, operand 3, single buffered']
    #allocation9 [shape = 's32[1]{0}', space=sflag, size = 0x4, scoped, tag = 'scoped memory for tpu_custom_call.1']
    #allocation10 [shape = 'u8[131072]{0}', space=vmem, size = 0x20000, scoped, tag = 'output window, operand 0, single buffered']
    %11 = vsyncpa [#allocation6], 0
    %12 = vsyncpa [#allocation9], 0
    %13 = vsyncpa [#allocation7], 0
    // Predicated region
    $region2: #{tpu_custom_call.1} parent=1 // pred_check
      _
    $region3: #{tpu_custom_call.1} parent=1 // pred_check_branch
      %15 = sbr.rel (0) target = $region5
    $region4: #{tpu_custom_call.1} parent=1 // pred_region
      %s16 = sadd.s32 0, 0
      %s17 = sld [smem:[#allocation3 + %s16]]
      %s18 = smul.u32 2, %s17
      %s20 = ssub.s32 4096, 4096
      %21 = vsyncadd [#allocation6], %s20
      %s22 = smul.addr %s18, 64
      %s23 = scalar_lea.hbm %s2, %s22
      %s24 = sshll.u32 [#allocation5], 4
      %s25 = int_to_ptr.vmem [resolvable:$true] %s24
      %30 = dma.hbm_to_vmem [thread:$0]  %s23, 4096, %s25, [#allocation6], 128, 128, 8
    $region5: #{tpu_custom_call.1} parent=1 // pred_fallthru
      _
    // Predicated region
    $region6: #{tpu_custom_call.1} parent=1 // pred_check
      _
    $region7: #{tpu_custom_call.1} parent=1 // pred_check_branch
      %32 = sbr.rel (0) target = $region9
    $region8: #{tpu_custom_call.1} parent=1 // pred_region
      %s33 = sadd.s32 0, 0
      %s34 = sld [smem:[#allocation3 + %s33]]
      %s35 = smul.u32 32, %s34
      %s37 = ssub.s32 2048, 2048
      %38 = vsyncadd [#allocation9], %s37
      %s39 = smul.addr %s35, 64
      %s40 = scalar_lea.hbm %s3, %s39
      %s41 = sshll.u32 [#allocation8], 4
      %s42 = int_to_ptr.vmem [resolvable:$true] %s41
      %47 = dma.hbm_to_vmem [thread:$0]  %s40, 2048, %s42, [#allocation9], 64, 64, 4
    $region9: #{tpu_custom_call.1} parent=1 // pred_fallthru
      _
    // Predicated region
    $region10: #{tpu_custom_call.1} parent=1 // pred_check
      _
    $region11: #{tpu_custom_call.1} parent=1 // pred_check_branch
      %49 = sbr.rel (0) target = $region13
    $region12: #{tpu_custom_call.1} parent=1 // pred_region
      %50 = dma.done [#allocation6], 4096
    $region13: #{tpu_custom_call.1} parent=1 // pred_fallthru
      _
    // Predicated region
    $region14: #{tpu_custom_call.1} parent=1 // pred_check
      _
    $region15: #{tpu_custom_call.1} parent=1 // pred_check_branch
      %52 = sbr.rel (0) target = $region17
    $region16: #{tpu_custom_call.1} parent=1 // pred_region
      %53 = dma.done [#allocation9], 2048
    $region17: #{tpu_custom_call.1} parent=1 // pred_fallthru
      _
    %s54 = sadd.s32 0, 0
    %s55 = sld [smem:[#allocation3 + %s54]]
    %s56 = smul.u32 2, %s55
    %s57 = sadd.s32 0, 0
    %s58 = sld [smem:[#allocation3 + %s57]]
    %s59 = smul.u32 32, %s58
    %p61 = scmp.eq.s32.totalorder 0, 0
    // Predicated region
    $region18: #{tpu_custom_call.1} parent=1 // pred_check
      %p62 = pneg %p61
    $region19: #{tpu_custom_call.1} parent=1 // pred_check_branch
      %64 = sbr.rel (%p62) target = $region21
    $region20: #{tpu_custom_call.1} parent=1 // pred_region
      %65 = vst [vmem:[#allocation10] sm:$0xff] 0.0
      %66 = vst [vmem:[#allocation10 + $0x8] sm:$0xff] 0.0
      %67 = vst [vmem:[#allocation10 + $0x10] sm:$0xff] 0.0
      %68 = vst [vmem:[#allocation10 + $0x18] sm:$0xff] 0.0
      %69 = vst [vmem:[#allocation10 + $0x20] sm:$0xff] 0.0
      %70 = vst [vmem:[#allocation10 + $0x28] sm:$0xff] 0.0
      %71 = vst [vmem:[#allocation10 + $0x30] sm:$0xff] 0.0
      %72 = vst [vmem:[#allocation10 + $0x38] sm:$0xff] 0.0
      %73 = vst [vmem:[#allocation10 + $0x40] sm:$0xff] 0.0
      %74 = vst [vmem:[#allocation10 + $0x48] sm:$0xff] 0.0
      %75 = vst [vmem:[#allocation10 + $0x50] sm:$0xff] 0.0
      %76 = vst [vmem:[#allocation10 + $0x58] sm:$0xff] 0.0
      %77 = vst [vmem:[#allocation10 + $0x60] sm:$0xff] 0.0
      %78 = vst [vmem:[#allocation10 + $0x68] sm:$0xff] 0.0
      %79 = vst [vmem:[#allocation10 + $0x70] sm:$0xff] 0.0
      %80 = vst [vmem:[#allocation10 + $0x78] sm:$0xff] 0.0
      %81 = vst [vmem:[#allocation10 + $0x80] sm:$0xff] 0.0
      %82 = vst [vmem:[#allocation10 + $0x88] sm:$0xff] 0.0
      %83 = vst [vmem:[#allocation10 + $0x90] sm:$0xff] 0.0
      %84 = vst [vmem:[#allocation10 + $0x98] sm:$0xff] 0.0
      %85 = vst [vmem:[#allocation10 + $0xa0] sm:$0xff] 0.0
      %86 = vst [vmem:[#allocation10 + $0xa8] sm:$0xff] 0.0
      %87 = vst [vmem:[#allocation10 + $0xb0] sm:$0xff] 0.0
      %88 = vst [vmem:[#allocation10 + $0xb8] sm:$0xff] 0.0
      %89 = vst [vmem:[#allocation10 + $0xc0] sm:$0xff] 0.0
      %90 = vst [vmem:[#allocation10 + $0xc8] sm:$0xff] 0.0
      %91 = vst [vmem:[#allocation10 + $0xd0] sm:$0xff] 0.0
      %92 = vst [vmem:[#allocation10 + $0xd8] sm:$0xff] 0.0
      %93 = vst [vmem:[#allocation10 + $0xe0] sm:$0xff] 0.0
      %94 = vst [vmem:[#allocation10 + $0xe8] sm:$0xff] 0.0
      %95 = vst [vmem:[#allocation10 + $0xf0] sm:$0xff] 0.0
      %96 = vst [vmem:[#allocation10 + $0xf8] sm:$0xff] 0.0
    $region21: #{tpu_custom_call.1} parent=1 // pred_fallthru
      _
    %s97 = sld [smem:[#allocation4]]
    %p98 = scmp.lt.s32.totalorder 0, %s97
    // Predicated region
    $region22: #{tpu_custom_call.1} parent=1 // pred_check
      %p99 = pneg %p98
    $region23: #{tpu_custom_call.1} parent=1 // pred_check_branch
      %101 = sbr.rel (%p99) target = $region25
    $region24: #{tpu_custom_call.1} parent=1 // pred_region
      %v102 = vld [vmem:[#allocation5] sm:$0xff]
      %v103 = vld [vmem:[#allocation5 + $0x8] sm:$0xff]
      %v104 = vld [vmem:[#allocation5 + $0x10] sm:$0xff]
      %v105 = vld [vmem:[#allocation5 + $0x18] sm:$0xff]
      %v106 = vld [vmem:[#allocation5 + $0x20] sm:$0xff]
      %v107 = vld [vmem:[#allocation5 + $0x28] sm:$0xff]
      %v108 = vld [vmem:[#allocation5 + $0x30] sm:$0xff]
      %v109 = vld [vmem:[#allocation5 + $0x38] sm:$0xff]
      %v110 = vld [vmem:[#allocation5 + $0x40] sm:$0xff]
      %v111 = vld [vmem:[#allocation5 + $0x48] sm:$0xff]
      %v112 = vld [vmem:[#allocation5 + $0x50] sm:$0xff]
      %v113 = vld [vmem:[#allocation5 + $0x58] sm:$0xff]
      %v114 = vld [vmem:[#allocation5 + $0x60] sm:$0xff]
      %v115 = vld [vmem:[#allocation5 + $0x68] sm:$0xff]
      %v116 = vld [vmem:[#allocation5 + $0x70] sm:$0xff]
      %v117 = vld [vmem:[#allocation5 + $0x78] sm:$0xff]
      %v118 = vld [vmem:[#allocation5 + $0x80] sm:$0xff]
      %v119 = vld [vmem:[#allocation5 + $0x88] sm:$0xff]
      %v120 = vld [vmem:[#allocation5 + $0x90] sm:$0xff]
      %v121 = vld [vmem:[#allocation5 + $0x98] sm:$0xff]
      %v122 = vld [vmem:[#allocation5 + $0xa0] sm:$0xff]
      %v123 = vld [vmem:[#allocation5 + $0xa8] sm:$0xff]
      %v124 = vld [vmem:[#allocation5 + $0xb0] sm:$0xff]
      %v125 = vld [vmem:[#allocation5 + $0xb8] sm:$0xff]
      %v126 = vld [vmem:[#allocation5 + $0xc0] sm:$0xff]
      %v127 = vld [vmem:[#allocation5 + $0xc8] sm:$0xff]
      %v128 = vld [vmem:[#allocation5 + $0xd0] sm:$0xff]
      %v129 = vld [vmem:[#allocation5 + $0xd8] sm:$0xff]
      %v130 = vld [vmem:[#allocation5 + $0xe0] sm:$0xff]
      %v131 = vld [vmem:[#allocation5 + $0xe8] sm:$0xff]
      %v132 = vld [vmem:[#allocation5 + $0xf0] sm:$0xff]
      %v133 = vld [vmem:[#allocation5 + $0xf8] sm:$0xff]
      %v134 = vld [vmem:[#allocation8] sm:$0xf]
      %v135 = vld [vmem:[#allocation8 + $0x4] sm:$0xf]
      %v136 = vld [vmem:[#allocation8 + $0x8] sm:$0xf]
      %v137 = vld [vmem:[#allocation8 + $0xc] sm:$0xf]
      %v138 = vld [vmem:[#allocation8 + $0x10] sm:$0xf]
      %v139 = vld [vmem:[#allocation8 + $0x14] sm:$0xf]
      %v140 = vld [vmem:[#allocation8 + $0x18] sm:$0xf]
      %v141 = vld [vmem:[#allocation8 + $0x1c] sm:$0xf]
      %v142 = vld [vmem:[#allocation8 + $0x20] sm:$0xf]
      %v143 = vld [vmem:[#allocation8 + $0x24] sm:$0xf]
      %v144 = vld [vmem:[#allocation8 + $0x28] sm:$0xf]
      %v145 = vld [vmem:[#allocation8 + $0x2c] sm:$0xf]
      %v146 = vld [vmem:[#allocation8 + $0x30] sm:$0xf]
      %v147 = vld [vmem:[#allocation8 + $0x34] sm:$0xf]
      %v148 = vld [vmem:[#allocation8 + $0x38] sm:$0xf]
      %v149 = vld [vmem:[#allocation8 + $0x3c] sm:$0xf]
      %v150 = vld [vmem:[#allocation8 + $0x40] sm:$0xf]
      %v151 = vld [vmem:[#allocation8 + $0x44] sm:$0xf]
      %v152 = vld [vmem:[#allocation8 + $0x48] sm:$0xf]
      %v153 = vld [vmem:[#allocation8 + $0x4c] sm:$0xf]
      %v154 = vld [vmem:[#allocation8 + $0x50] sm:$0xf]
      %v155 = vld [vmem:[#allocation8 + $0x54] sm:$0xf]
      %v156 = vld [vmem:[#allocation8 + $0x58] sm:$0xf]
      %v157 = vld [vmem:[#allocation8 + $0x5c] sm:$0xf]
      %v158 = vld [vmem:[#allocation8 + $0x60] sm:$0xf]
      %v159 = vld [vmem:[#allocation8 + $0x64] sm:$0xf]
      %v160 = vld [vmem:[#allocation8 + $0x68] sm:$0xf]
      %v161 = vld [vmem:[#allocation8 + $0x6c] sm:$0xf]
      %v162 = vld [vmem:[#allocation8 + $0x70] sm:$0xf]
      %v163 = vld [vmem:[#allocation8 + $0x74] sm:$0xf]
      %v164 = vld [vmem:[#allocation8 + $0x78] sm:$0xf]
      %v165 = vld [vmem:[#allocation8 + $0x7c] sm:$0xf]
      %v166 = vld [vmem:[#allocation10] sm:$0xff]
      %v167 = vld [vmem:[#allocation10 + $0x8] sm:$0xff]
      %v168 = vld [vmem:[#allocation10 + $0x10] sm:$0xff]
      %v169 = vld [vmem:[#allocation10 + $0x18] sm:$0xff]
      %v170 = vld [vmem:[#allocation10 + $0x20] sm:$0xff]
      %v171 = vld [vmem:[#allocation10 + $0x28] sm:$0xff]
      %v172 = vld [vmem:[#allocation10 + $0x30] sm:$0xff]
      %v173 = vld [vmem:[#allocation10 + $0x38] sm:$0xff]
      %v174 = vld [vmem:[#allocation10 + $0x40] sm:$0xff]
      %v175 = vld [vmem:[#allocation10 + $0x48] sm:$0xff]
      %v176 = vld [vmem:[#allocation10 + $0x50] sm:$0xff]
      %v177 = vld [vmem:[#allocation10 + $0x58] sm:$0xff]
      %v178 = vld [vmem:[#allocation10 + $0x60] sm:$0xff]
      %v179 = vld [vmem:[#allocation10 + $0x68] sm:$0xff]
      %v180 = vld [vmem:[#allocation10 + $0x70] sm:$0xff]
      %v181 = vld [vmem:[#allocation10 + $0x78] sm:$0xff]
      %v182 = vld [vmem:[#allocation10 + $0x80] sm:$0xff]
      %v183 = vld [vmem:[#allocation10 + $0x88] sm:$0xff]
      %v184 = vld [vmem:[#allocation10 + $0x90] sm:$0xff]
      %v185 = vld [vmem:[#allocation10 + $0x98] sm:$0xff]
      %v186 = vld [vmem:[#allocation10 + $0xa0] sm:$0xff]
      %v187 = vld [vmem:[#allocation10 + $0xa8] sm:$0xff]
      %v188 = vld [vmem:[#allocation10 + $0xb0] sm:$0xff]
      %v189 = vld [vmem:[#allocation10 + $0xb8] sm:$0xff]
      %v190 = vld [vmem:[#allocation10 + $0xc0] sm:$0xff]
      %v191 = vld [vmem:[#allocation10 + $0xc8] sm:$0xff]
      %v192 = vld [vmem:[#allocation10 + $0xd0] sm:$0xff]
      %v193 = vld [vmem:[#allocation10 + $0xd8] sm:$0xff]
      %v194 = vld [vmem:[#allocation10 + $0xe0] sm:$0xff]
      %v195 = vld [vmem:[#allocation10 + $0xe8] sm:$0xff]
      %v196 = vld [vmem:[#allocation10 + $0xf0] sm:$0xff]
      %v197 = vld [vmem:[#allocation10 + $0xf8] sm:$0xff]
      %v230 = vunpack.c.l.b16 %v102
      %v231 = vunpack.c.h.b16 %v102
      %v232 = vunpack.c.l.b16 %v103
      %v233 = vunpack.c.h.b16 %v103
      %v234 = vunpack.c.l.b16 %v104
      %v235 = vunpack.c.h.b16 %v104
      %v236 = vunpack.c.l.b16 %v105
      %v237 = vunpack.c.h.b16 %v105
      %v238 = vunpack.c.l.b16 %v106
      %v239 = vunpack.c.h.b16 %v106
      %v240 = vunpack.c.l.b16 %v107
      %v241 = vunpack.c.h.b16 %v107
      %v242 = vunpack.c.l.b16 %v108
      %v243 = vunpack.c.h.b16 %v108
      %v244 = vunpack.c.l.b16 %v109
      %v245 = vunpack.c.h.b16 %v109
      %v246 = vunpack.c.l.b16 %v110
      %v247 = vunpack.c.h.b16 %v110
      %v248 = vunpack.c.l.b16 %v111
      %v249 = vunpack.c.h.b16 %v111
      %v250 = vunpack.c.l.b16 %v112
      %v251 = vunpack.c.h.b16 %v112
      %v252 = vunpack.c.l.b16 %v113
      %v253 = vunpack.c.h.b16 %v113
      %v254 = vunpack.c.l.b16 %v114
      %v255 = vunpack.c.h.b16 %v114
      %v256 = vunpack.c.l.b16 %v115
      %v257 = vunpack.c.h.b16 %v115
      %v258 = vunpack.c.l.b16 %v116
      %v259 = vunpack.c.h.b16 %v116
      %v260 = vunpack.c.l.b16 %v117
      %v261 = vunpack.c.h.b16 %v117
      %v262 = vunpack.c.l.b16 %v118
      %v263 = vunpack.c.h.b16 %v118
      %v264 = vunpack.c.l.b16 %v119
      %v265 = vunpack.c.h.b16 %v119
      %v266 = vunpack.c.l.b16 %v120
      %v267 = vunpack.c.h.b16 %v120
      %v268 = vunpack.c.l.b16 %v121
      %v269 = vunpack.c.h.b16 %v121
      %v270 = vunpack.c.l.b16 %v122
      %v271 = vunpack.c.h.b16 %v122
      %v272 = vunpack.c.l.b16 %v123
      %v273 = vunpack.c.h.b16 %v123
      %v274 = vunpack.c.l.b16 %v124
      %v275 = vunpack.c.h.b16 %v124
      %v276 = vunpack.c.l.b16 %v125
      %v277 = vunpack.c.h.b16 %v125
      %v278 = vunpack.c.l.b16 %v126
      %v279 = vunpack.c.h.b16 %v126
      %v280 = vunpack.c.l.b16 %v127
      %v281 = vunpack.c.h.b16 %v127
      %v282 = vunpack.c.l.b16 %v128
      %v283 = vunpack.c.h.b16 %v128
      %v284 = vunpack.c.l.b16 %v129
      %v285 = vunpack.c.h.b16 %v129
      %v286 = vunpack.c.l.b16 %v130
      %v287 = vunpack.c.h.b16 %v130
      %v288 = vunpack.c.l.b16 %v131
      %v289 = vunpack.c.h.b16 %v131
      %v290 = vunpack.c.l.b16 %v132
      %v291 = vunpack.c.h.b16 %v132
      %v292 = vunpack.c.l.b16 %v133
      %v293 = vunpack.c.h.b16 %v133
      %v294 = vpack.c.b16 %v232, %v230
      %v295 = vpack.c.b16 %v233, %v231
      %v296 = vpack.c.b16 %v236, %v234
      %v297 = vpack.c.b16 %v237, %v235
      %v298 = vpack.c.b16 %v240, %v238
      %v299 = vpack.c.b16 %v241, %v239
      %v300 = vpack.c.b16 %v244, %v242
      %v301 = vpack.c.b16 %v245, %v243
      %v302 = vpack.c.b16 %v248, %v246
      %v303 = vpack.c.b16 %v249, %v247
      %v304 = vpack.c.b16 %v252, %v250
      %v305 = vpack.c.b16 %v253, %v251
      %v306 = vpack.c.b16 %v256, %v254
      %v307 = vpack.c.b16 %v257, %v255
      %v308 = vpack.c.b16 %v260, %v258
      %v309 = vpack.c.b16 %v261, %v259
      %v310 = vpack.c.b16 %v264, %v262
      %v311 = vpack.c.b16 %v265, %v263
      %v312 = vpack.c.b16 %v268, %v266
      %v313 = vpack.c.b16 %v269, %v267
      %v314 = vpack.c.b16 %v272, %v270
      %v315 = vpack.c.b16 %v273, %v271
      %v316 = vpack.c.b16 %v276, %v274
      %v317 = vpack.c.b16 %v277, %v275
      %v318 = vpack.c.b16 %v280, %v278
      %v319 = vpack.c.b16 %v281, %v279
      %v320 = vpack.c.b16 %v284, %v282
      %v321 = vpack.c.b16 %v285, %v283
      %v322 = vpack.c.b16 %v288, %v286
      %v323 = vpack.c.b16 %v289, %v287
      %v324 = vpack.c.b16 %v292, %v290
      %v325 = vpack.c.b16 %v293, %v291
      %v390 = vunpack.c.l.b16 %v134
      %v391 = vunpack.c.l.b16 %v135
      %v392 = vunpack.c.l.b16 %v136
      %v393 = vunpack.c.l.b16 %v137
      %v394 = vunpack.c.l.b16 %v138
      %v395 = vunpack.c.l.b16 %v139
      %v396 = vunpack.c.l.b16 %v140
      %v397 = vunpack.c.l.b16 %v141
      %v398 = vunpack.c.l.b16 %v142
      %v399 = vunpack.c.l.b16 %v143
      %v400 = vunpack.c.l.b16 %v144
      %v401 = vunpack.c.l.b16 %v145
      %v402 = vunpack.c.l.b16 %v146
      %v403 = vunpack.c.l.b16 %v147
      %v404 = vunpack.c.l.b16 %v148
      %v405 = vunpack.c.l.b16 %v149
      %v406 = vunpack.c.l.b16 %v150
      %v407 = vunpack.c.l.b16 %v151
      %v408 = vunpack.c.l.b16 %v152
      %v409 = vunpack.c.l.b16 %v153
      %v410 = vunpack.c.l.b16 %v154
      %v411 = vunpack.c.l.b16 %v155
      %v412 = vunpack.c.l.b16 %v156
      %v413 = vunpack.c.l.b16 %v157
      %v414 = vunpack.c.l.b16 %v158
      %v415 = vunpack.c.l.b16 %v159
      %v416 = vunpack.c.l.b16 %v160
      %v417 = vunpack.c.l.b16 %v161
      %v418 = vunpack.c.l.b16 %v162
      %v419 = vunpack.c.l.b16 %v163
      %v420 = vunpack.c.l.b16 %v164
      %v421 = vunpack.c.l.b16 %v165
      %v422 = vpack.c.b16 %v391, %v390
      %v423 = vpack.c.b16 %v393, %v392
      %v424 = vpack.c.b16 %v395, %v394
      %v425 = vpack.c.b16 %v397, %v396
      %v426 = vpack.c.b16 %v399, %v398
      %v427 = vpack.c.b16 %v401, %v400
      %v428 = vpack.c.b16 %v403, %v402
      %v429 = vpack.c.b16 %v405, %v404
      %v430 = vpack.c.b16 %v407, %v406
      %v431 = vpack.c.b16 %v409, %v408
      %v432 = vpack.c.b16 %v411, %v410
      %v433 = vpack.c.b16 %v413, %v412
      %v434 = vpack.c.b16 %v415, %v414
      %v435 = vpack.c.b16 %v417, %v416
      %v436 = vpack.c.b16 %v419, %v418
      %v437 = vpack.c.b16 %v421, %v420
      %454 = vmatprep.subr.bf16.mxu0 0
      %455 = vmatpush1.bf16.msra.mxu0 %v429
      %456 = vmatprep.subr.bf16.mxu0 0
      %457 = vmatpush1.bf16.msra.mxu0 %v428
      %458 = vmatprep.subr.bf16.mxu0 0
      %459 = vmatpush1.bf16.msra.mxu0 %v427
      %460 = vmatprep.subr.bf16.mxu0 0
      %461 = vmatpush1.bf16.msra.mxu0 %v426
      %462 = vmatprep.subr.bf16.mxu0 0
      %463 = vmatpush1.bf16.msra.mxu0 %v425
      %464 = vmatprep.subr.bf16.mxu0 0
      %465 = vmatpush1.bf16.msra.mxu0 %v424
      %466 = vmatprep.subr.bf16.mxu0 0
      %467 = vmatpush1.bf16.msra.mxu0 %v423
      %468 = vmatprep.subr.bf16.mxu0 0
      %469 = vmatpush1.bf16.msra.mxu0 %v422
      %470 = vmatprep.subr.bf16.mxu0 0
      %471 = vmatpush2.bf16.msra.mxu0 %v437
      %472 = vmatprep.subr.bf16.mxu0 0
      %473 = vmatpush2.bf16.msra.mxu0 %v436
      %474 = vmatprep.subr.bf16.mxu0 0
      %475 = vmatpush2.bf16.msra.mxu0 %v435
      %476 = vmatprep.subr.bf16.mxu0 0
      %477 = vmatpush2.bf16.msra.mxu0 %v434
      %478 = vmatprep.subr.bf16.mxu0 0
      %479 = vmatpush2.bf16.msra.mxu0 %v433
      %480 = vmatprep.subr.bf16.mxu0 0
      %481 = vmatpush2.bf16.msra.mxu0 %v432
      %482 = vmatprep.subr.bf16.mxu0 0
      %483 = vmatpush2.bf16.msra.mxu0 %v431
      %484 = vmatprep.subr.bf16.mxu0 0
      %485 = vmatpush2.bf16.msra.mxu0 %v430
      %486 = vmatprep.mubr.bf16.mxu0 %v295
      %487 = vmatmul.mubr.bf16.gmra.mxu0 %v294
      %v488 = vpop.f32.mrf.mxu0
      %v489 = vadd.f32 0.0, %v488
      %v490 = vpop.f32.mrf.mxu0
      %v491 = vpop.f32.mrf.mxu0
      %v492 = vadd.f32 0.0, %v491
      %v493 = vpop.f32.mrf.mxu0
      %494 = vmatprep.mubr.bf16.mxu0 %v297
      %495 = vmatmul.mubr.bf16.gmra.mxu0 %v296
      %v496 = vpop.f32.mrf.mxu0
      %v497 = vadd.f32 0.0, %v496
      %v498 = vpop.f32.mrf.mxu0
      %v499 = vpop.f32.mrf.mxu0
      %v500 = vadd.f32 0.0, %v499
      %v501 = vpop.f32.mrf.mxu0
      %502 = vmatprep.mubr.bf16.mxu0 %v299
      %503 = vmatmul.mubr.bf16.gmra.mxu0 %v298
      %v504 = vpop.f32.mrf.mxu0
      %v505 = vadd.f32 0.0, %v504
      %v506 = vpop.f32.mrf.mxu0
      %v507 = vpop.f32.mrf.mxu0
      %v508 = vadd.f32 0.0, %v507
      %v509 = vpop.f32.mrf.mxu0
      %510 = vmatprep.mubr.bf16.mxu0 %v301
      %511 = vmatmul.mubr.bf16.gmra.mxu0 %v300
      %v512 = vpop.f32.mrf.mxu0
      %v513 = vadd.f32 0.0, %v512
      %v514 = vpop.f32.mrf.mxu0
      %v515 = vpop.f32.mrf.mxu0
      %v516 = vadd.f32 0.0, %v515
      %v517 = vpop.f32.mrf.mxu0
      %518 = vmatprep.mubr.bf16.mxu0 %v303
      %519 = vmatmul.mubr.bf16.gmra.mxu0 %v302
      %v520 = vpop.f32.mrf.mxu0
      %v521 = vadd.f32 0.0, %v520
      %v522 = vpop.f32.mrf.mxu0
      %v523 = vpop.f32.mrf.mxu0
      %v524 = vadd.f32 0.0, %v523
      %v525 = vpop.f32.mrf.mxu0
      %526 = vmatprep.mubr.bf16.mxu0 %v305
      %527 = vmatmul.mubr.bf16.gmra.mxu0 %v304
      %v528 = vpop.f32.mrf.mxu0
      %v529 = vadd.f32 0.0, %v528
      %v530 = vpop.f32.mrf.mxu0
      %v531 = vpop.f32.mrf.mxu0
      %v532 = vadd.f32 0.0, %v531
      %v533 = vpop.f32.mrf.mxu0
      %534 = vmatprep.mubr.bf16.mxu0 %v307
      %535 = vmatmul.mubr.bf16.gmra.mxu0 %v306
      %v536 = vpop.f32.mrf.mxu0
      %v537 = vadd.f32 0.0, %v536
      %v538 = vpop.f32.mrf.mxu0
      %v539 = vpop.f32.mrf.mxu0
      %v540 = vadd.f32 0.0, %v539
      %v541 = vpop.f32.mrf.mxu0
      %542 = vmatprep.mubr.bf16.mxu0 %v309
      %543 = vmatmul.mubr.bf16.gmra.mxu0 %v308
      %v544 = vpop.f32.mrf.mxu0
      %v545 = vadd.f32 0.0, %v544
      %v546 = vpop.f32.mrf.mxu0
      %v547 = vpop.f32.mrf.mxu0
      %v548 = vadd.f32 0.0, %v547
      %v549 = vpop.f32.mrf.mxu0
      %550 = vmatprep.mubr.bf16.mxu0 %v311
      %551 = vmatmul.mubr.bf16.gmra.mxu0 %v310
      %v552 = vpop.f32.mrf.mxu0
      %v553 = vadd.f32 0.0, %v552
      %v554 = vpop.f32.mrf.mxu0
      %v555 = vpop.f32.mrf.mxu0
      %v556 = vadd.f32 0.0, %v555
      %v557 = vpop.f32.mrf.mxu0
      %558 = vmatprep.mubr.bf16.mxu0 %v313
      %559 = vmatmul.mubr.bf16.gmra.mxu0 %v312
      %v560 = vpop.f32.mrf.mxu0
      %v561 = vadd.f32 0.0, %v560
      %v562 = vpop.f32.mrf.mxu0
      %v563 = vpop.f32.mrf.mxu0
      %v564 = vadd.f32 0.0, %v563
      %v565 = vpop.f32.mrf.mxu0
      %566 = vmatprep.mubr.bf16.mxu0 %v315
      %567 = vmatmul.mubr.bf16.gmra.mxu0 %v314
      %v568 = vpop.f32.mrf.mxu0
      %v569 = vadd.f32 0.0, %v568
      %v570 = vpop.f32.mrf.mxu0
      %v571 = vpop.f32.mrf.mxu0
      %v572 = vadd.f32 0.0, %v571
      %v573 = vpop.f32.mrf.mxu0
      %574 = vmatprep.mubr.bf16.mxu0 %v317
      %575 = vmatmul.mubr.bf16.gmra.mxu0 %v316
      %v576 = vpop.f32.mrf.mxu0
      %v577 = vadd.f32 0.0, %v576
      %v578 = vpop.f32.mrf.mxu0
      %v579 = vpop.f32.mrf.mxu0
      %v580 = vadd.f32 0.0, %v579
      %v581 = vpop.f32.mrf.mxu0
      %582 = vmatprep.mubr.bf16.mxu0 %v319
      %583 = vmatmul.mubr.bf16.gmra.mxu0 %v318
      %v584 = vpop.f32.mrf.mxu0
      %v585 = vadd.f32 0.0, %v584
      %v586 = vpop.f32.mrf.mxu0
      %v587 = vpop.f32.mrf.mxu0
      %v588 = vadd.f32 0.0, %v587
      %v589 = vpop.f32.mrf.mxu0
      %590 = vmatprep.mubr.bf16.mxu0 %v321
      %591 = vmatmul.mubr.bf16.gmra.mxu0 %v320
      %v592 = vpop.f32.mrf.mxu0
      %v593 = vadd.f32 0.0, %v592
      %v594 = vpop.f32.mrf.mxu0
      %v595 = vpop.f32.mrf.mxu0
      %v596 = vadd.f32 0.0, %v595
      %v597 = vpop.f32.mrf.mxu0
      %598 = vmatprep.mubr.bf16.mxu0 %v323
      %599 = vmatmul.mubr.bf16.gmra.mxu0 %v322
      %v600 = vpop.f32.mrf.mxu0
      %v601 = vadd.f32 0.0, %v600
      %v602 = vpop.f32.mrf.mxu0
      %v603 = vpop.f32.mrf.mxu0
      %v604 = vadd.f32 0.0, %v603
      %v605 = vpop.f32.mrf.mxu0
      %606 = vmatprep.mubr.bf16.mxu0 %v325
      %607 = vmatmul.mubr.bf16.gmra.mxu0 %v324
      %v608 = vpop.f32.mrf.mxu0
      %v609 = vadd.f32 0.0, %v608
      %v610 = vpop.f32.mrf.mxu0
      %v611 = vpop.f32.mrf.mxu0
      %v612 = vadd.f32 0.0, %v611
      %v613 = vpop.f32.mrf.mxu0
      %614 = vdwg.mxu0
      %v615 = vadd.f32 %v166, %v489
      %v616 = vadd.f32 %v167, %v492
      %v617 = vadd.f32 %v168, %v497
      %v618 = vadd.f32 %v169, %v500
      %v619 = vadd.f32 %v170, %v505
      %v620 = vadd.f32 %v171, %v508
      %v621 = vadd.f32 %v172, %v513
      %v622 = vadd.f32 %v173, %v516
      %v623 = vadd.f32 %v174, %v521
      %v624 = vadd.f32 %v175, %v524
      %v625 = vadd.f32 %v176, %v529
      %v626 = vadd.f32 %v177, %v532
      %v627 = vadd.f32 %v178, %v537
      %v628 = vadd.f32 %v179, %v540
      %v629 = vadd.f32 %v180, %v545
      %v630 = vadd.f32 %v181, %v548
      %v631 = vadd.f32 %v182, %v553
      %v632 = vadd.f32 %v183, %v556
      %v633 = vadd.f32 %v184, %v561
      %v634 = vadd.f32 %v185, %v564
      %v635 = vadd.f32 %v186, %v569
      %v636 = vadd.f32 %v187, %v572
      %v637 = vadd.f32 %v188, %v577
      %v638 = vadd.f32 %v189, %v580
      %v639 = vadd.f32 %v190, %v585
      %v640 = vadd.f32 %v191, %v588
      %v641 = vadd.f32 %v192, %v593
      %v642 = vadd.f32 %v193, %v596
      %v643 = vadd.f32 %v194, %v601
      %v644 = vadd.f32 %v195, %v604
      %v645 = vadd.f32 %v196, %v609
      %v646 = vadd.f32 %v197, %v612
      %647 = vst [vmem:[#allocation10] sm:$0xff] %v615
      %648 = vst [vmem:[#allocation10 + $0x8] sm:$0xff] %v616
      %649 = vst [vmem:[#allocation10 + $0x10] sm:$0xff] %v617
      %650 = vst [vmem:[#allocation10 + $0x18] sm:$0xff] %v618
      %651 = vst [vmem:[#allocation10 + $0x20] sm:$0xff] %v619
      %652 = vst [vmem:[#allocation10 + $0x28] sm:$0xff] %v620
      %653 = vst [vmem:[#allocation10 + $0x30] sm:$0xff] %v621
      %654 = vst [vmem:[#allocation10 + $0x38] sm:$0xff] %v622
      %655 = vst [vmem:[#allocation10 + $0x40] sm:$0xff] %v623
      %656 = vst [vmem:[#allocation10 + $0x48] sm:$0xff] %v624
      %657 = vst [vmem:[#allocation10 + $0x50] sm:$0xff] %v625
      %658 = vst [vmem:[#allocation10 + $0x58] sm:$0xff] %v626
      %659 = vst [vmem:[#allocation10 + $0x60] sm:$0xff] %v627
      %660 = vst [vmem:[#allocation10 + $0x68] sm:$0xff] %v628
      %661 = vst [vmem:[#allocation10 + $0x70] sm:$0xff] %v629
      %662 = vst [vmem:[#allocation10 + $0x78] sm:$0xff] %v630
      %663 = vst [vmem:[#allocation10 + $0x80] sm:$0xff] %v631
      %664 = vst [vmem:[#allocation10 + $0x88] sm:$0xff] %v632
      %665 = vst [vmem:[#allocation10 + $0x90] sm:$0xff] %v633
      %666 = vst [vmem:[#allocation10 + $0x98] sm:$0xff] %v634
      %667 = vst [vmem:[#allocation10 + $0xa0] sm:$0xff] %v635
      %668 = vst [vmem:[#allocation10 + $0xa8] sm:$0xff] %v636
      %669 = vst [vmem:[#allocation10 + $0xb0] sm:$0xff] %v637
      %670 = vst [vmem:[#allocation10 + $0xb8] sm:$0xff] %v638
      %671 = vst [vmem:[#allocation10 + $0xc0] sm:$0xff] %v639
      %672 = vst [vmem:[#allocation10 + $0xc8] sm:$0xff] %v640
      %673 = vst [vmem:[#allocation10 + $0xd0] sm:$0xff] %v641
      %674 = vst [vmem:[#allocation10 + $0xd8] sm:$0xff] %v642
      %675 = vst [vmem:[#allocation10 + $0xe0] sm:$0xff] %v643
      %676 = vst [vmem:[#allocation10 + $0xe8] sm:$0xff] %v644
      %677 = vst [vmem:[#allocation10 + $0xf0] sm:$0xff] %v645
      %678 = vst [vmem:[#allocation10 + $0xf8] sm:$0xff] %v646
    $region25: #{tpu_custom_call.1} parent=1 // pred_fallthru
      _
    // Predicated region
    $region26: #{tpu_custom_call.1} parent=1 // pred_check
      _
    $region27: #{tpu_custom_call.1} parent=1 // pred_check_branch
      %680 = sbr.rel (0) target = $region29
    $region28: #{tpu_custom_call.1} parent=1 // pred_region
      %s682 = ssub.s32 4096, 4096
      %683 = vsyncadd [#allocation7], %s682
      %s684 = sshll.u32 [#allocation10], 4
      %s685 = int_to_ptr.vmem [resolvable:$true] %s684
      %690 = dma.vmem_to_hbm [thread:$0]  %s685, 4096, %s4, [#allocation7], 128, 128, 8
    $region29: #{tpu_custom_call.1} parent=1 // pred_fallthru
      _
    // Predicated region
    $region30: #{tpu_custom_call.1} parent=1 // pred_check
      _
    $region31: #{tpu_custom_call.1} parent=1 // pred_check_branch
      %692 = sbr.rel (0) target = $region33
    $region32: #{tpu_custom_call.1} parent=1 // pred_region
      %693 = dma.done [#allocation7], 4096
    $region33: #{tpu_custom_call.1} parent=1 // pred_fallthru
      _
    %694 = vsyncpa [#allocation6], 1
    %695 = vsyncpa [#allocation9], 1
    %696 = vsyncpa [#allocation7], 1

</llo_original>
